<compile_context>
chip_gen: v6e
topology: v6e:2x2x1
jax: 0.10.0
libtpu: 0.0.40
codegen_flags: <defaults>
</compile_context>

<pallas_src>
import math

import jax
import jax.numpy as jnp
from jax import lax
from jax.experimental import pallas as pl
from jax.experimental.pallas import tpu as pltpu


# ----------------------------------------------------------------------------- helpers

def _round_up(a: int, b: int) -> int:
    return (a + b - 1) // b * b


def _sublane_granularity(dtype) -> int:
    # min second-to-last tile dim per dtype packing: f32 -> 8, bf16 -> 16, 8-bit -> 32
    return {4: 8, 2: 16, 1: 32}.get(jnp.dtype(dtype).itemsize, 8)


def _vmem_limit_and_budget():
    """(scoped VMEM limit to request, byte budget to size tiles against)."""
    cap = None
    try:
        info = pltpu.get_tpu_info()
        cap = getattr(info, "vmem_capacity_bytes", None)
    except Exception:
        cap = None
    if not cap:
        cap = 64 << 20                      # assume the smallest (v7x) if unknown
    limit = min(cap - (8 << 20), 100 << 20)  # leave headroom for compiler scratch
    budget = int(limit * 0.8)                # size tiles below the requested limit
    return limit, budget


_TM_PREFS = (512, 256, 128, 64, 32, 16, 8)
_TN_PREFS = (2048, 1024, 512, 256, 128)


def _pick(full: int, prefs) -> int:
    for p in prefs:
        if p <= full:
            return p
    return full


def _choose_tiles(M, N, K, in_bytes, out_bytes, budget, dtype):
    gran = _sublane_granularity(dtype)
    mp_g = _round_up(M, gran)
    np128 = _round_up(N, 128)
    kp128 = _round_up(K, 128)

    tm = _pick(mp_g, _TM_PREFS)
    tn = _pick(np128, _TN_PREFS)
    tk = kp128                      # collapse the contraction into the tile

    def footprint(tm_, tn_, tk_, acc):
        # double-buffered inputs + double-buffered output (+ f32 acc if K split)
        f = 2 * (tm_ * tk_ + tn_ * tk_) * in_bytes + 2 * tm_ * tn_ * out_bytes
        if acc:
            f += tm_ * tn_ * 4
        return f

    # Shrink tn, then tm, while the collapsed-K working set exceeds the budget.
    while footprint(tm, tn, tk, False) > budget and tn > 256:
        tn //= 2
    while footprint(tm, tn, tk, False) > budget and tm > 128:
        tm //= 2
    # Last resort (huge d_model): split the contraction -> accumulator kernel.
    if footprint(tm, tn, tk, False) > budget:
        while footprint(tm, tn, tk, True) > budget and tk > 512:
            tk = max(512, _round_up(tk // 2, 128))

    # Megacore (v7x): if the M axis has a single block, try to give the N axis
    # at least two blocks so both TensorCores get work.
    if _round_up(M, tm) // tm <= 1:
        while _round_up(N, tn) // tn < 2 and tn > 256:
            tn //= 2

    return tm, tn, tk


# ----------------------------------------------------------------------------- kernels

def _unembed_kernel(x_ref, w_ref, o_ref):
    """Single-pass tile: x (tm, K) . w (tn, K) contracted on the last dims."""
    o_ref[...] = lax.dot_general(
        x_ref[...], w_ref[...],
        dimension_numbers=(((1,), (1,)), ((), ())),   # x @ w.T on the MXU
        preferred_element_type=jnp.float32,
    ).astype(o_ref.dtype)


def _unembed_kernel_ksplit(x_ref, w_ref, o_ref, acc_ref):
    """Fallback when d_model does not fit VMEM: accumulate over the K grid axis."""
    @pl.when(pl.program_id(2) == 0)
    def _():
        acc_ref[...] = jnp.zeros_like(acc_ref)

    acc_ref[...] += lax.dot_general(
        x_ref[...], w_ref[...],
        dimension_numbers=(((1,), (1,)), ((), ())),
        preferred_element_type=jnp.float32,
    )

    @pl.when(pl.program_id(2) == pl.num_programs(2) - 1)
    def _():
        o_ref[...] = acc_ref[...].astype(o_ref.dtype)


# ----------------------------------------------------------------------------- wrapper

def unembed_forward(x, weight, *, tm=None, tn=None, tk=None):
    """F.linear(x, weight) == x @ weight.T  (no bias).

    x:      (..., d_model)
    weight: (vocab, d_model)   -- PyTorch Linear layout, consumed as-is (no .T)
    returns (..., vocab)
    """
    *lead, K = x.shape
    N, Kw = weight.shape
    assert K == Kw, "d_model mismatch between input and unembed weight"
    M = math.prod(lead) if lead else 1

    # Unify dtypes explicitly so the MXU path is deterministic (no silent promotion).
    if x.dtype != weight.dtype:
        cdt = jnp.promote_types(x.dtype, weight.dtype)
        x = x.astype(cdt)
        weight = weight.astype(cdt)
    out_dtype = x.dtype
    in_bytes = jnp.dtype(x.dtype).itemsize
    out_bytes = jnp.dtype(out_dtype).itemsize

    vmem_limit, vmem_budget = _vmem_limit_and_budget()
    a_tm, a_tn, a_tk = _choose_tiles(M, N, K, in_bytes, out_bytes, vmem_budget, x.dtype)
    tm = tm or a_tm
    tn = tn or a_tn
    tk = tk or a_tk

    Mp, Np, Kp = _round_up(M, tm), _round_up(N, tn), _round_up(K, tk)
    split_k = (Kp // tk) > 1

    # Pads only fire for ragged shapes (d_model / vocab are normally aligned);
    # zero K-padding is contraction-safe, padded M/N rows/cols are sliced off.
    x2 = x.reshape(M, K)
    if (Mp, Kp) != (M, K):
        x2 = jnp.zeros((Mp, Kp), x2.dtype).at[:M, :K].set(x2)
    w2 = weight                                  # (vocab, d_model): no transpose
    if (Np, Kp) != (N, K):
        w2 = jnp.zeros((Np, Kp), w2.dtype).at[:N, :K].set(w2)

    cost = pl.CostEstimate(
        flops=2 * M * N * K,
        transcendentals=0,
        bytes_accessed=M * K * in_bytes + N * K * in_bytes + M * N * out_bytes,
    )

    if not split_k:
        # grid = (M-tiles, N-tiles); x tile resident across the inner N loop.
        out_padded = pl.pallas_call(
            _unembed_kernel,
            out_shape=jax.ShapeDtypeStruct((Mp, Np), out_dtype),
            grid_spec=pltpu.PrefetchScalarGridSpec(
                num_scalar_prefetch=0,
                grid=(Mp // tm, Np // tn),
                in_specs=[
                    pl.BlockSpec((tm, Kp), lambda i, j: (i, 0)),   # x tile (resident over j)
                    pl.BlockSpec((tn, Kp), lambda i, j: (j, 0)),   # weight tile, native layout
                ],
                out_specs=pl.BlockSpec((tm, tn), lambda i, j: (i, j)),
            ),
            compiler_params=pltpu.CompilerParams(
                dimension_semantics=("parallel", "parallel"),
                vmem_limit_bytes=vmem_limit,
            ),
            cost_estimate=cost,
        )(x2, w2)
    else:
        # Fallback for d_model too large for VMEM: K-innermost accumulator grid.
        out_padded = pl.pallas_call(
            _unembed_kernel_ksplit,
            out_shape=jax.ShapeDtypeStruct((Mp, Np), out_dtype),
            grid_spec=pltpu.PrefetchScalarGridSpec(
                num_scalar_prefetch=0,
                grid=(Mp // tm, Np // tn, Kp // tk),
                in_specs=[
                    pl.BlockSpec((tm, tk), lambda i, j, k: (i, k)),
                    pl.BlockSpec((tn, tk), lambda i, j, k: (j, k)),
                ],
                out_specs=pl.BlockSpec((tm, tn), lambda i, j, k: (i, j)),
                scratch_shapes=[pltpu.VMEM((tm, tn), jnp.float32)],
            ),
            compiler_params=pltpu.CompilerParams(
                dimension_semantics=("parallel", "parallel", "arbitrary"),
                vmem_limit_bytes=vmem_limit,
            ),
            cost_estimate=cost,
        )(x2, w2)

    out = out_padded[:M, :N]
    return out.reshape(*lead, N)


def reference_forward(x, weight):
    """Pure-JAX reference mirroring F.linear(x, weight) (f32 accumulation)."""
    return jnp.einsum(
        "...k,nk->...n",
        x.astype(jnp.float32),
        weight.astype(jnp.float32),
    )


if __name__ == "__main__":
    # Small config consistent with the module: batch=2, seq=8, d_model=32, vocab=64.
    B, S, Dm, V = 2, 8, 32, 64

    key = jax.random.PRNGKey(0)
    kx, kw = jax.random.split(key)

    # Primary path: bf16 operands (the dtype this kernel is tuned for).
    x_bf16 = jax.random.normal(kx, (B, S, Dm), jnp.float32).astype(jnp.bfloat16)
    w_bf16 = (0.02 * jax.random.normal(kw, (V, Dm), jnp.float32)).astype(jnp.bfloat16)

    out_bf16 = unembed_forward(x_bf16, w_bf16)
    jax.block_until_ready(out_bf16)
    ref_bf16 = reference_forward(x_bf16, w_bf16)
    assert out_bf16.shape == (B, S, V), f"bad output shape {out_bf16.shape}"
    assert jnp.allclose(out_bf16.astype(jnp.float32), ref_bf16, atol=2e-2, rtol=2e-2), \
        "bf16 mismatch vs reference"

    # Secondary check: f32 operands (tight tolerance).
    x_f32 = jax.random.normal(kx, (B, S, Dm), jnp.float32)
    w_f32 = 0.02 * jax.random.normal(kw, (V, Dm), jnp.float32)
    out_f32 = unembed_forward(x_f32, w_f32)
    jax.block_until_ready(out_f32)
    ref_f32 = reference_forward(x_f32, w_f32)
    assert out_f32.shape == (B, S, V)
    assert jnp.allclose(out_f32, ref_f32, atol=1e-4, rtol=1e-4), "f32 mismatch vs reference"

    print("KERNEL_OK")
</pallas_src>

<mosaic_0001>
module attributes {stable_mosaic.version = 11 : i64} {
  func.func @_unembed_kernel(%arg0: i32, %arg1: i32, %arg2: memref<16x128xbf16, #tpu.memory_space<vmem>>, %arg3: memref<128x128xbf16, #tpu.memory_space<vmem>>, %arg4: memref<16x128xbf16, #tpu.memory_space<vmem>>) attributes {dimension_semantics = [#tpu.dimension_semantics<parallel>, #tpu.dimension_semantics<parallel>], iteration_bounds = array<i64: 1, 1>, scalar_prefetch = 0 : i64, scratch_operands = 0 : i64, tpu.core_type = #tpu.core_type<tc>, window_params = [{transform_indices = @transform_0, window_bounds = array<i64: 16, 128>}, {transform_indices = @transform_1, window_bounds = array<i64: 128, 128>}, {transform_indices = @transform_2, window_bounds = array<i64: 16, 128>}]} {
    %c0 = arith.constant 0 : index
    %c0_0 = arith.constant 0 : index
    %0 = vector.load %arg2[%c0, %c0_0] : memref<16x128xbf16, #tpu.memory_space<vmem>>, vector<16x128xbf16>
    %c0_1 = arith.constant 0 : index
    %c0_2 = arith.constant 0 : index
    %1 = vector.load %arg3[%c0_1, %c0_2] : memref<128x128xbf16, #tpu.memory_space<vmem>>, vector<128x128xbf16>
    %cst = arith.constant dense<0.000000e+00> : vector<16x128xf32>
    %2 = tpu.matmul %0, %1, %cst {dimension_numbers = #tpu.dot_dimension_numbers<[1], [1], [0], [0], [0, 0, 1, 0], [], []>} : vector<16x128xbf16>, vector<128x128xbf16>, vector<16x128xf32> -> vector<16x128xf32>
    %3 = arith.truncf %2 : vector<16x128xf32> to vector<16x128xbf16>
    %c0_3 = arith.constant 0 : index
    %c0_4 = arith.constant 0 : index
    %4 = vector.load %arg4[%c0_3, %c0_4] : memref<16x128xbf16, #tpu.memory_space<vmem>>, vector<16x128xbf16>
    tpu.vector_store %arg4[%c0_3, %c0_4], %3 {strides = array<i32>} : memref<16x128xbf16, #tpu.memory_space<vmem>>, vector<16x128xbf16>,
    return
  }
  func.func @transform_0(%arg0: i32, %arg1: i32) -> (i32, i32) {
    %c0_i32 = arith.constant 0 : i32
    %c0_i32_0 = arith.constant 0 : i32
    return %arg0, %c0_i32 : i32, i32
  }
  func.func @transform_1(%arg0: i32, %arg1: i32) -> (i32, i32) {
    %c0_i32 = arith.constant 0 : i32
    %c0_i32_0 = arith.constant 0 : i32
    return %arg1, %c0_i32 : i32, i32
  }
  func.func @transform_2(%arg0: i32, %arg1: i32) -> (i32, i32) {
    %c0_i32 = arith.constant 0 : i32
    return %arg0, %arg1 : i32, i32
  }
}

</mosaic_0001>

<llo_original>
// kernel: tpu_custom_call.1
$region0: #{tpu_custom_call.1}
  #allocation0 [shape = 'u32[]', space=smem, size = 0x4, offset = 0x4, fixed_abs, tag = 'smem constant byte address 0x4 - core index']
  #allocation1 [shape = 'u32[144,128]{1,0:T(1,128)}', space=vmem, size = 0x12000, scoped, tag = 'internal scratch']
  %s0 = inlined_call_operand.hbm [shape: bf16[16,128], index: 0, kind: input, shape index: {}]
  %s1 = inlined_call_operand.hbm [shape: bf16[128,128], index: 1, kind: input, shape index: {}]
  %s2 = inlined_call_operand.hbm [shape: bf16[16,128], index: 2, kind: output, shape index: {}]
  %s3 = sld [smem:[#allocation0]]
  $region26: #{tpu_custom_call.1} parent=0
    _
  %s5 = ssub.s32 1, %s3
  %s6 = scalar_select 0, %s5, %s3
  $region1: #{tpu_custom_call.1} parent=0
    #allocation2 [shape = 'u8[4096]{0}', space=vmem, size = 0x1000, scoped, tag = 'input window, operand 0, single buffered']
    #allocation3 [shape = 's32[1]{0}', space=sflag, size = 0x4, scoped, tag = 'scoped memory for tpu_custom_call.1']
    #allocation4 [shape = 's32[1]{0}', space=sflag, size = 0x4, scoped, tag = 'scoped memory for tpu_custom_call.1']
    #allocation5 [shape = 'u8[32768]{0}', space=vmem, size = 0x8000, scoped, tag = 'input window, operand 1, single buffered']
    #allocation6 [shape = 's32[1]{0}', space=sflag, size = 0x4, scoped, tag = 'scoped memory for tpu_custom_call.1']
    #allocation7 [shape = 'u8[4096]{0}', space=vmem, size = 0x1000, scoped, tag = 'output window, operand 0, single buffered']
    %7 = vsyncpa [#allocation3], 0
    %8 = vsyncpa [#allocation6], 0
    %9 = vsyncpa [#allocation4], 0
    // Predicated region
    $region2: #{tpu_custom_call.1} parent=1 // pred_check
      _
    $region3: #{tpu_custom_call.1} parent=1 // pred_check_branch
      %11 = sbr.rel (0) target = $region5
    $region4: #{tpu_custom_call.1} parent=1 // pred_region
      %s13 = ssub.s32 128, 128
      %14 = vsyncadd [#allocation3], %s13
      %s15 = sshll.u32 [#allocation2], 4
      %s16 = int_to_ptr.vmem [resolvable:$true] %s15
      %21 = dma.hbm_to_vmem [thread:$0]  %s0, 128, %s16, [#allocation3], 64, 64, 4
    $region5: #{tpu_custom_call.1} parent=1 // pred_fallthru
      _
    // Predicated region
    $region6: #{tpu_custom_call.1} parent=1 // pred_check
      _
    $region7: #{tpu_custom_call.1} parent=1 // pred_check_branch
      %23 = sbr.rel (0) target = $region9
    $region8: #{tpu_custom_call.1} parent=1 // pred_region
      %s25 = ssub.s32 1024, 1024
      %26 = vsyncadd [#allocation6], %s25
      %s27 = sshll.u32 [#allocation5], 4
      %s28 = int_to_ptr.vmem [resolvable:$true] %s27
      %33 = dma.hbm_to_vmem [thread:$0]  %s1, 1024, %s28, [#allocation6], 64, 64, 4
    $region9: #{tpu_custom_call.1} parent=1 // pred_fallthru
      _
    // Predicated region
    $region10: #{tpu_custom_call.1} parent=1 // pred_check
      _
    $region11: #{tpu_custom_call.1} parent=1 // pred_check_branch
      %35 = sbr.rel (0) target = $region13
    $region12: #{tpu_custom_call.1} parent=1 // pred_region
      %36 = dma.done [#allocation3], 128
    $region13: #{tpu_custom_call.1} parent=1 // pred_fallthru
      _
    // Predicated region
    $region14: #{tpu_custom_call.1} parent=1 // pred_check
      _
    $region15: #{tpu_custom_call.1} parent=1 // pred_check_branch
      %38 = sbr.rel (0) target = $region17
    $region16: #{tpu_custom_call.1} parent=1 // pred_region
      %39 = dma.done [#allocation6], 1024
    $region17: #{tpu_custom_call.1} parent=1 // pred_fallthru
      _
    %v41 = vld [vmem:[#allocation2] sm:$0xf]
    %v42 = vld [vmem:[#allocation2 + $0x4] sm:$0xf]
    %v43 = vld [vmem:[#allocation5] sm:$0xf]
    %v44 = vld [vmem:[#allocation5 + $0x4] sm:$0xf]
    %v45 = vld [vmem:[#allocation5 + $0x8] sm:$0xf]
    %v46 = vld [vmem:[#allocation5 + $0xc] sm:$0xf]
    %v47 = vld [vmem:[#allocation5 + $0x10] sm:$0xf]
    %v48 = vld [vmem:[#allocation5 + $0x14] sm:$0xf]
    %v49 = vld [vmem:[#allocation5 + $0x18] sm:$0xf]
    %v50 = vld [vmem:[#allocation5 + $0x1c] sm:$0xf]
    %v51 = vld [vmem:[#allocation5 + $0x20] sm:$0xf]
    %v52 = vld [vmem:[#allocation5 + $0x24] sm:$0xf]
    %v53 = vld [vmem:[#allocation5 + $0x28] sm:$0xf]
    %v54 = vld [vmem:[#allocation5 + $0x2c] sm:$0xf]
    %v55 = vld [vmem:[#allocation5 + $0x30] sm:$0xf]
    %v56 = vld [vmem:[#allocation5 + $0x34] sm:$0xf]
    %v57 = vld [vmem:[#allocation5 + $0x38] sm:$0xf]
    %v58 = vld [vmem:[#allocation5 + $0x3c] sm:$0xf]
    %v61 = vunpack.c.l.b16 %v41
    %v62 = vunpack.c.l.b16 %v42
    %v63 = vpack.c.b16 %v62, %v61
    %v81 = vunpack.c.l.b16 %v43
    %v82 = vunpack.c.l.b16 %v44
    %v83 = vunpack.c.l.b16 %v45
    %v84 = vunpack.c.l.b16 %v46
    %v85 = vunpack.c.l.b16 %v47
    %v86 = vunpack.c.l.b16 %v48
    %v87 = vunpack.c.l.b16 %v49
    %v88 = vunpack.c.l.b16 %v50
    %v89 = vunpack.c.l.b16 %v51
    %v90 = vunpack.c.l.b16 %v52
    %v91 = vunpack.c.l.b16 %v53
    %v92 = vunpack.c.l.b16 %v54
    %v93 = vunpack.c.l.b16 %v55
    %v94 = vunpack.c.l.b16 %v56
    %v95 = vunpack.c.l.b16 %v57
    %v96 = vunpack.c.l.b16 %v58
    %v97 = vpack.c.b16 %v82, %v81
    %v98 = vpack.c.b16 %v84, %v83
    %v99 = vpack.c.b16 %v86, %v85
    %v100 = vpack.c.b16 %v88, %v87
    %v101 = vpack.c.b16 %v90, %v89
    %v102 = vpack.c.b16 %v92, %v91
    %v103 = vpack.c.b16 %v94, %v93
    %v104 = vpack.c.b16 %v96, %v95
    %113 = vmatprep.subr.bf16.mxu0 0
    %114 = vmatpush1.bf16.xpose.msra.mxu0 %v104
    %115 = vmatprep.subr.bf16.mxu0 0
    %116 = vmatpush1.bf16.xpose.msra.mxu0 %v103
    %117 = vmatprep.subr.bf16.mxu0 0
    %118 = vmatpush1.bf16.xpose.msra.mxu0 %v102
    %119 = vmatprep.subr.bf16.mxu0 0
    %120 = vmatpush1.bf16.xpose.msra.mxu0 %v101
    %121 = vmatprep.subr.bf16.mxu0 0
    %122 = vmatpush1.bf16.xpose.msra.mxu0 %v100
    %123 = vmatprep.subr.bf16.mxu0 0
    %124 = vmatpush1.bf16.xpose.msra.mxu0 %v99
    %125 = vmatprep.subr.bf16.mxu0 0
    %126 = vmatpush1.bf16.xpose.msra.mxu0 %v98
    %127 = vmatprep.subr.bf16.mxu0 0
    %128 = vmatpush1.bf16.xpose.msra.mxu0 %v97
    %129 = vmatprep.subr.bf16.mxu0 0
    %130 = vmatpush2.bf16.xpose.msra.mxu0 0
    %131 = vmatprep.subr.bf16.mxu0 0
    %132 = vmatpush2.bf16.xpose.msra.mxu0 0
    %133 = vmatprep.subr.bf16.mxu0 0
    %134 = vmatpush2.bf16.xpose.msra.mxu0 0
    %135 = vmatprep.subr.bf16.mxu0 0
    %136 = vmatpush2.bf16.xpose.msra.mxu0 0
    %137 = vmatprep.subr.bf16.mxu0 0
    %138 = vmatpush2.bf16.xpose.msra.mxu0 0
    %139 = vmatprep.subr.bf16.mxu0 0
    %140 = vmatpush2.bf16.xpose.msra.mxu0 0
    %141 = vmatprep.subr.bf16.mxu0 0
    %142 = vmatpush2.bf16.xpose.msra.mxu0 0
    %143 = vmatprep.subr.bf16.mxu0 0
    %144 = vmatpush2.bf16.xpose.msra.mxu0 0
    %145 = vmatprep.mubr.bf16.mxu0 0
    %146 = vmatmul.mubr.bf16.gmra.mxu0 %v63
    %v147 = vpop.f32.mrf.mxu0
    %v148 = vadd.f32 0.0, %v147
    %v149 = vpop.f32.mrf.mxu0
    %v150 = vpop.f32.mrf.mxu0
    %v151 = vadd.f32 0.0, %v150
    %v152 = vpop.f32.mrf.mxu0
    %153 = vdwg.mxu0
    %v154 = vpack.c.bf16 %v151, %v148
    %v156 = vunpack.c.l.b16 %v154
    %v157 = vunpack.c.h.b16 %v154
    %v158 = vpack.c.b16 %v156, %v156
    %v159 = vpack.c.b16 %v157, %v157
    %162 = vst [vmem:[#allocation7] sm:$0xf] %v158
    %163 = vst [vmem:[#allocation7 + $0x4] sm:$0xf] %v159
    // Predicated region
    $region18: #{tpu_custom_call.1} parent=1 // pred_check
      _
    $region19: #{tpu_custom_call.1} parent=1 // pred_check_branch
      %165 = sbr.rel (0) target = $region21
    $region20: #{tpu_custom_call.1} parent=1 // pred_region
      %s167 = ssub.s32 128, 128
      %168 = vsyncadd [#allocation4], %s167
      %s169 = sshll.u32 [#allocation7], 4
      %s170 = int_to_ptr.vmem [resolvable:$true] %s169
      %175 = dma.vmem_to_hbm [thread:$0]  %s170, 128, %s2, [#allocation4], 64, 64, 4
    $region21: #{tpu_custom_call.1} parent=1 // pred_fallthru
      _
    // Predicated region
    $region22: #{tpu_custom_call.1} parent=1 // pred_check
      _
    $region23: #{tpu_custom_call.1} parent=1 // pred_check_branch
      %177 = sbr.rel (0) target = $region25
    $region24: #{tpu_custom_call.1} parent=1 // pred_region
      %178 = dma.done [#allocation4], 128
    $region25: #{tpu_custom_call.1} parent=1 // pred_fallthru
      _
    %179 = vsyncpa [#allocation3], 1
    %180 = vsyncpa [#allocation6], 1
    %181 = vsyncpa [#allocation4], 1

</llo_original>
